<compile_context>
chip_gen: v6e
topology: v6e:2x2x1
jax: 0.10.0
libtpu: 0.0.40
codegen_flags: <defaults>
</compile_context>

<pallas_src>
import functools
import math

import jax
import jax.numpy as jnp
import numpy as np
from jax.experimental import pallas as pl
from jax.experimental.pallas import tpu as pltpu

_HALF_PI = math.pi / 2.0
_INV_SQRT2 = 0.7071067811865476


def _fan_kernel(x_ref, w_ref, b_ref, o_ref, *, trig_dim):
    # Single MXU pass: bf16 operands (cast in-kernel), f32 accumulation.
    y = jnp.dot(x_ref[...].astype(jnp.bfloat16), w_ref[...],
                preferred_element_type=jnp.float32)
    y = y + b_ref[...]                       # bias (incl. -pi/2 shift) added in f32
    # Lanes [0, trig_dim): [p, p - pi/2]  ->  cos gives [cos(p), sin(p)].
    trig = jnp.cos(y[:, :trig_dim])
    # Lanes [trig_dim, out_dim): pre-activation g -> exact erf GELU.
    g = y[:, trig_dim:]
    g = 0.5 * g * (1.0 + jax.lax.erf(g * _INV_SQRT2))
    # Two lane-aligned, lane-dense stores; no concat, no scratch slab.
    o_ref[:, :trig_dim] = trig.astype(o_ref.dtype)
    o_ref[:, trig_dim:] = g.astype(o_ref.dtype)


def pack_fan_params(wp, bp, wg, bg):
    """Pack PyTorch-layout FANLayer params once (hoist out of the per-call path)."""
    w_cat = jnp.concatenate([wp.T, wp.T, wg.T], axis=1).astype(jnp.bfloat16)
    b_cat = jnp.concatenate([bp, bp - _HALF_PI, bg]).reshape(1, -1).astype(jnp.float32)
    return w_cat, b_cat


def fan_layer(src, w_cat, b_cat, *, p_dim, block_m=512):
    """Fused FANLayer forward.  src: (B, D) f32; w_cat/b_cat from pack_fan_params."""
    B, D = src.shape
    out_dim = w_cat.shape[1]
    # Row tile: large tiles amortize per-grid-step overhead; round up to a
    # sublane multiple when B is small.  (On v7x, for production B prefer a
    # block_m that yields an even grid >= 2 so both TensorCores are used.)
    bm = min(block_m, max(8, -(-B // 8) * 8))
    grid = (pl.cdiv(B, bm),)

    kernel = functools.partial(_fan_kernel, trig_dim=2 * p_dim)
    return pl.pallas_call(
        kernel,
        out_shape=jax.ShapeDtypeStruct((B, out_dim), jnp.float32),
        grid=grid,
        in_specs=[
            pl.BlockSpec((bm, D), lambda i: (i, 0)),          # activations (f32)
            pl.BlockSpec((D, out_dim), lambda i: (0, 0)),     # packed weight (bf16)
            pl.BlockSpec((1, out_dim), lambda i: (0, 0)),     # packed bias (f32)
        ],
        out_specs=pl.BlockSpec((bm, out_dim), lambda i: (i, 0)),
        compiler_params=pltpu.CompilerParams(
            dimension_semantics=("parallel",),
        ),
    )(src, w_cat, b_cat)


def fan_layer_reference(src, wp, bp, wg, bg):
    """Pure-JAX f32 reference (HIGHEST matmul precision) of the same forward."""
    p = jnp.dot(src, wp.T, precision=jax.lax.Precision.HIGHEST) + bp
    g = jnp.dot(src, wg.T, precision=jax.lax.Precision.HIGHEST) + bg
    g = 0.5 * g * (1.0 + jax.lax.erf(g * _INV_SQRT2))
    return jnp.concatenate([jnp.cos(p), jnp.sin(p), g], axis=-1)


if __name__ == "__main__":
    INPUT_DIM, OUTPUT_DIM, P_RATIO = 256, 256, 0.25
    P_DIM = int(OUTPUT_DIM * P_RATIO)          # 64
    G_DIM = OUTPUT_DIM - 2 * P_DIM             # 128
    B = 128

    key = jax.random.PRNGKey(0)
    kx, kwp, kbp, kwg, kbg = jax.random.split(key, 5)
    bound = 1.0 / math.sqrt(INPUT_DIM)         # PyTorch nn.Linear init range
    wp = jax.random.uniform(kwp, (P_DIM, INPUT_DIM), jnp.float32, -bound, bound)
    bp = jax.random.uniform(kbp, (P_DIM,), jnp.float32, -bound, bound)
    wg = jax.random.uniform(kwg, (G_DIM, INPUT_DIM), jnp.float32, -bound, bound)
    bg = jax.random.uniform(kbg, (G_DIM,), jnp.float32, -bound, bound)
    src = jax.random.normal(kx, (B, INPUT_DIM), jnp.float32)

    # Pack once (hoisted); block_m=32 -> grid of 4 row tiles to exercise the
    # pipelined / parallel grid at this small test size.
    w_cat, b_cat = pack_fan_params(wp, bp, wg, bg)
    fan_fn = jax.jit(functools.partial(fan_layer, p_dim=P_DIM, block_m=32))
    out = jax.block_until_ready(fan_fn(src, w_cat, b_cat))
    ref = jax.block_until_ready(jax.jit(fan_layer_reference)(src, wp, bp, wg, bg))

    assert out.shape == (B, OUTPUT_DIM), out.shape
    # bf16 MXU operands vs f32 reference -> loose tolerance.
    np.testing.assert_allclose(np.asarray(out), np.asarray(ref), rtol=2e-2, atol=2e-2)
    print("KERNEL_OK")
</pallas_src>

<mosaic_0001>
module attributes {stable_mosaic.version = 11 : i64} {
  func.func @_fan_kernel(%arg0: i32, %arg1: memref<32x256xf32, #tpu.memory_space<vmem>>, %arg2: memref<256x256xbf16, #tpu.memory_space<vmem>>, %arg3: memref<1x256xf32, #tpu.memory_space<vmem>>, %arg4: memref<32x256xf32, #tpu.memory_space<vmem>>) attributes {dimension_semantics = [#tpu.dimension_semantics<parallel>], iteration_bounds = array<i64: 4>, scalar_prefetch = 0 : i64, scratch_operands = 0 : i64, tpu.core_type = #tpu.core_type<tc>, window_params = [{transform_indices = @transform_0, window_bounds = array<i64: 32, 256>}, {pipeline_mode = #tpu.pipeline_mode<synchronous>, transform_indices = @transform_1, window_bounds = array<i64: 256, 256>}, {pipeline_mode = #tpu.pipeline_mode<synchronous>, transform_indices = @transform_2, window_bounds = array<i64: 1, 256>}, {transform_indices = @transform_3, window_bounds = array<i64: 32, 256>}]} {
    %c0 = arith.constant 0 : index
    %c0_0 = arith.constant 0 : index
    %0 = vector.load %arg1[%c0, %c0_0] : memref<32x256xf32, #tpu.memory_space<vmem>>, vector<32x256xf32>
    %1 = arith.truncf %0 : vector<32x256xf32> to vector<32x256xbf16>
    %c0_1 = arith.constant 0 : index
    %c0_2 = arith.constant 0 : index
    %2 = vector.load %arg2[%c0_1, %c0_2] : memref<256x256xbf16, #tpu.memory_space<vmem>>, vector<256x256xbf16>
    %cst = arith.constant dense<0.000000e+00> : vector<32x256xf32>
    %3 = tpu.matmul %1, %2, %cst {dimension_numbers = #tpu.dot_dimension_numbers<[1], [0], [0], [1], [0, 0, 1, 1], [], []>} : vector<32x256xbf16>, vector<256x256xbf16>, vector<32x256xf32> -> vector<32x256xf32>
    %c0_3 = arith.constant 0 : index
    %c0_4 = arith.constant 0 : index
    %4 = vector.load %arg3[%c0_3, %c0_4] : memref<1x256xf32, #tpu.memory_space<vmem>>, vector<1x256xf32>
    %5 = vector.broadcast %4 : vector<1x256xf32> to vector<32x256xf32>
    %6 = arith.addf %3, %5 : vector<32x256xf32>
    %7 = vector.extract_strided_slice %6 {offsets = [0, 0], sizes = [32, 128], strides = [1, 1]} : vector<32x256xf32> to vector<32x128xf32>
    %8 = math.cos %7 : vector<32x128xf32>
    %9 = vector.extract_strided_slice %6 {offsets = [0, 128], sizes = [32, 128], strides = [1, 1]} : vector<32x256xf32> to vector<32x128xf32>
    %cst_5 = arith.constant 5.000000e-01 : f32
    %10 = vector.broadcast %cst_5 : f32 to vector<32x128xf32>
    %11 = arith.mulf %10, %9 : vector<32x128xf32>
    %cst_6 = arith.constant 0.707106769 : f32
    %12 = vector.broadcast %cst_6 : f32 to vector<32x128xf32>
    %13 = arith.mulf %9, %12 : vector<32x128xf32>
    %14 = math.erf %13 : vector<32x128xf32>
    %cst_7 = arith.constant 1.000000e+00 : f32
    %15 = vector.broadcast %cst_7 : f32 to vector<32x128xf32>
    %16 = arith.addf %15, %14 : vector<32x128xf32>
    %17 = arith.mulf %11, %16 : vector<32x128xf32>
    %c0_8 = arith.constant 0 : index
    %c0_9 = arith.constant 0 : index
    %18 = vector.load %arg4[%c0_8, %c0_9] : memref<32x256xf32, #tpu.memory_space<vmem>>, vector<32x128xf32>
    tpu.vector_store %arg4[%c0_8, %c0_9], %8 {strides = array<i32>} : memref<32x256xf32, #tpu.memory_space<vmem>>, vector<32x128xf32>,
    %c0_10 = arith.constant 0 : index
    %c128 = arith.constant 128 : index
    %19 = vector.load %arg4[%c0_10, %c128] : memref<32x256xf32, #tpu.memory_space<vmem>>, vector<32x128xf32>
    tpu.vector_store %arg4[%c0_10, %c128], %17 {strides = array<i32>} : memref<32x256xf32, #tpu.memory_space<vmem>>, vector<32x128xf32>,
    return
  }
  func.func @transform_0(%arg0: i32) -> (i32, i32) {
    %c0_i32 = arith.constant 0 : i32
    %c0_i32_0 = arith.constant 0 : i32
    return %arg0, %c0_i32 : i32, i32
  }
  func.func @transform_1(%arg0: i32) -> (i32, i32) {
    %c0_i32 = arith.constant 0 : i32
    %c0_i32_0 = arith.constant 0 : i32
    %c0_i32_1 = arith.constant 0 : i32
    return %c0_i32, %c0_i32_0 : i32, i32
  }
  func.func @transform_2(%arg0: i32) -> (i32, i32) {
    %c0_i32 = arith.constant 0 : i32
    %c0_i32_0 = arith.constant 0 : i32
    %c0_i32_1 = arith.constant 0 : i32
    return %c0_i32, %c0_i32_0 : i32, i32
  }
  func.func @transform_3(%arg0: i32) -> (i32, i32) {
    %c0_i32 = arith.constant 0 : i32
    %c0_i32_0 = arith.constant 0 : i32
    return %arg0, %c0_i32 : i32, i32
  }
}

</mosaic_0001>

<llo_original>
// kernel: fan_layer.1
$region0: #{fan_layer.1}
  #allocation0 [shape = 'u32[]', space=smem, size = 0x4, offset = 0x4, fixed_abs, tag = 'smem constant byte address 0x4 - core index']
  #allocation1 [shape = 'u32[144,128]{1,0:T(1,128)}', space=vmem, size = 0x12000, scoped, tag = 'internal scratch']
  %s0 = inlined_call_operand.hbm [shape: f32[128,256], index: 0, kind: input, shape index: {}]
  %s1 = inlined_call_operand.hbm [shape: bf16[256,256], index: 1, kind: input, shape index: {}]
  %s2 = inlined_call_operand.vmem [shape: f32[1,256], index: 2, kind: input, shape index: {}]
  %s3 = inlined_call_operand.hbm [shape: f32[128,256], index: 3, kind: output, shape index: {}]
  %s4 = sld [smem:[#allocation0]]
  $region53: #{fan_layer.1} parent=0
    _
  %s6 = ssub.s32 1, %s4
  %s7 = scalar_select 0, %s6, %s4
  $region1: #{fan_layer.1} parent=0
    #allocation2 [shape = 'u8[65536]{0}', space=vmem, size = 0x10000, scoped, tag = 'input window, operand 0']
    #allocation3 [shape = 's32[2]{0}', space=sflag, size = 0x8, scoped, tag = 'scoped memory for fan_layer.1']
    #allocation4 [shape = 's32[2]{0}', space=sflag, size = 0x8, scoped, tag = 'scoped memory for fan_layer.1']
    #allocation5 [shape = 'u8[131072]{0}', space=vmem, size = 0x20000, scoped, tag = 'input window, operand 1, single buffered']
    #allocation6 [shape = 's32[1]{0}', space=sflag, size = 0x4, scoped, tag = 'scoped memory for fan_layer.1']
    #allocation7 [shape = 'u8[65536]{0}', space=vmem, size = 0x10000, scoped, tag = 'output window, operand 0']
    %8 = vsyncpa [#allocation3], 0
    %s9 = scalar_lea.sflag [#allocation3], 1
    %10 = vsyncpa %s9, 0
    %11 = vsyncpa [#allocation6], 0
    %12 = vsyncpa [#allocation4], 0
    %s13 = scalar_lea.sflag [#allocation4], 1
    %14 = vsyncpa %s13, 0
    loop: start=0, step=1, limit=6
    $region2: #{fan_layer.1} parent=1 // loop_pre_header
      _
    $region3: #{fan_layer.1} parent=1 // loop_header
      %s16 = sphi 0, %s20
      %p17 = scmp.ge.s32.totalorder %s16, 6
      %s26 = sphi 0, %s28
      %s29 = sphi 0, %s26
      %s30 = sphi 0, %s29
      %s46 = sphi 0, %s30
      %s50 = sphi 0, %s50
      %s52 = sphi 0, %s50
      %s53 = sphi 0, %s52
      %s67 = sphi 0, %s53
      %s71 = sphi 0, %s71
      %s73 = sphi 0, %s71
      %s74 = sphi 0, %s73
      %s88 = sphi 0, %s74
      %s94 = sphi 0, %s96
      %s97 = sphi 0, %s94
      %s98 = sphi 0, %s97
      %s114 = sphi 0, %s98
    $region4: #{fan_layer.1} parent=1 // loop_header_branch
      %19 = sbr.rel (%p17) target = $region8
    $region5: #{fan_layer.1} parent=1 // loop_body
      %s21 = ssub.s32 %s16, 1
      %s22 = ssub.s32 %s16, 2
      %s23 = sadd.s32 %s16, 1
      %s24 = ssub.s32 %s16, %s23
      %p25 = scmp.eq.s32.totalorder %s24, 0
      %s27 = sadd.s32 %s26, 1
      %s28 = scalar_select %p25, %s26, %s27
      %p31 = pneg %p25
      %p32 = scmp.eq.s32.totalorder %s16, 3
      %p33 = por %p31, %p32
      %p34 = scmp.ne.s32.totalorder %s26, %s29
      %p35 = scmp.eq.s32.totalorder %s16, 0
      %p36 = por %p34, %p35
      %p37 = scmp.ne.s32.totalorder %s26, %s29
      %p38 = scmp.eq.s32.totalorder %s21, 3
      %p39 = por %p37, %p38
      %p40 = scmp.ne.s32.totalorder %s29, %s30
      %p41 = scmp.eq.s32.totalorder %s21, 0
      %p42 = por %p40, %p41
      %p43 = scmp.ne.s32.totalorder %s29, %s30
      %p44 = scmp.eq.s32.totalorder %s22, 3
      %p45 = por %p43, %p44
      %p47 = scmp.ne.s32.totalorder %s30, %s46
      %p48 = scmp.eq.s32.totalorder %s22, 0
      %p49 = por %p47, %p48
      %s51 = sadd.s32 %s50, 1
      %p54 = scmp.eq.s32.totalorder %s16, 3
      %p55 = scmp.ne.s32.totalorder %s50, %s52
      %p56 = scmp.eq.s32.totalorder %s16, 0
      %p57 = por %p55, %p56
      %p58 = scmp.ne.s32.totalorder %s50, %s52
      %p59 = scmp.eq.s32.totalorder %s21, 3
      %p60 = por %p58, %p59
      %p61 = scmp.ne.s32.totalorder %s52, %s53
      %p62 = scmp.eq.s32.totalorder %s21, 0
      %p63 = por %p61, %p62
      %p64 = scmp.ne.s32.totalorder %s52, %s53
      %p65 = scmp.eq.s32.totalorder %s22, 3
      %p66 = por %p64, %p65
      %p68 = scmp.ne.s32.totalorder %s53, %s67
      %p69 = scmp.eq.s32.totalorder %s22, 0
      %p70 = por %p68, %p69
      %s72 = sadd.s32 %s71, 1
      %p75 = scmp.eq.s32.totalorder %s16, 3
      %p76 = scmp.ne.s32.totalorder %s71, %s73
      %p77 = scmp.eq.s32.totalorder %s16, 0
      %p78 = por %p76, %p77
      %p79 = scmp.ne.s32.totalorder %s71, %s73
      %p80 = scmp.eq.s32.totalorder %s21, 3
      %p81 = por %p79, %p80
      %p82 = scmp.ne.s32.totalorder %s73, %s74
      %p83 = scmp.eq.s32.totalorder %s21, 0
      %p84 = por %p82, %p83
      %p85 = scmp.ne.s32.totalorder %s73, %s74
      %p86 = scmp.eq.s32.totalorder %s22, 3
      %p87 = por %p85, %p86
      %p89 = scmp.ne.s32.totalorder %s74, %s88
      %p90 = scmp.eq.s32.totalorder %s22, 0
      %p91 = por %p89, %p90
      %s92 = ssub.s32 %s16, %s23
      %p93 = scmp.eq.s32.totalorder %s92, 0
      %s95 = sadd.s32 %s94, 1
      %s96 = scalar_select %p93, %s94, %s95
      %p99 = pneg %p93
      %p100 = scmp.eq.s32.totalorder %s16, 3
      %p101 = por %p99, %p100
      %p102 = scmp.ne.s32.totalorder %s94, %s97
      %p103 = scmp.eq.s32.totalorder %s16, 0
      %p104 = por %p102, %p103
      %p105 = scmp.ne.s32.totalorder %s94, %s97
      %p106 = scmp.eq.s32.totalorder %s21, 3
      %p107 = por %p105, %p106
      %p108 = scmp.ne.s32.totalorder %s97, %s98
      %p109 = scmp.eq.s32.totalorder %s21, 0
      %p110 = por %p108, %p109
      %p111 = scmp.ne.s32.totalorder %s97, %s98
      %p112 = scmp.eq.s32.totalorder %s22, 3
      %p113 = por %p111, %p112
      %p115 = scmp.ne.s32.totalorder %s98, %s114
      %p116 = scmp.eq.s32.totalorder %s22, 0
      %p117 = por %p115, %p116
      %p118 = scmp.le.s32.totalorder 1, %s16
      %p119 = scmp.lt.s32.totalorder %s16, 5
      %p120 = pnand %p118, %p119
      %p121 = pneg %p120
      // Predicated region
      $region9: #{fan_layer.1} parent=5 // pred_check
        _
      $region10: #{fan_layer.1} parent=5 // pred_check_branch
        %123 = sbr.rel (%p120) target = $region12
      $region11: #{fan_layer.1} parent=5 // pred_region
        %s124 = ssub.s32 %s16, 1
        // Predicated region
        $region13: #{fan_layer.1} parent=11 // pred_check
          %p125 = pneg %p63
        $region14: #{fan_layer.1} parent=11 // pred_check_branch
          %127 = sbr.rel (%p125) target = $region16
        $region15: #{fan_layer.1} parent=11 // pred_region
          %s129 = ssub.s32 4096, 4096
          %130 = vsyncadd [#allocation6], %s129
          %s131 = sshll.u32 [#allocation5], 4
          %s132 = int_to_ptr.vmem [resolvable:$true] %s131
          %137 = dma.hbm_to_vmem [thread:$0]  %s1, 4096, %s132, [#allocation6], 128, 128, 8
        $region16: #{fan_layer.1} parent=11 // pred_fallthru
          _
        // Predicated region
        $region17: #{fan_layer.1} parent=11 // pred_check
          %p138 = pneg %p84
        $region18: #{fan_layer.1} parent=11 // pred_check_branch
          %140 = sbr.rel (%p138) target = $region20
        $region19: #{fan_layer.1} parent=11 // pred_region
          _
        $region20: #{fan_layer.1} parent=11 // pred_fallthru
          _
      $region12: #{fan_layer.1} parent=5 // pred_fallthru
        _
      %p141 = scmp.lt.s32.totalorder %s16, 4
      // Predicated region
      $region21: #{fan_layer.1} parent=5 // pred_check
        %p142 = pneg %p141
      $region22: #{fan_layer.1} parent=5 // pred_check_branch
        %144 = sbr.rel (%p142) target = $region24
      $region23: #{fan_layer.1} parent=5 // pred_region
        // Predicated region
        $region25: #{fan_layer.1} parent=23 // pred_check
          %p145 = pneg %p36
        $region26: #{fan_layer.1} parent=23 // pred_check_branch
          %147 = sbr.rel (%p145) target = $region28
        $region27: #{fan_layer.1} parent=23 // pred_region
          %s148 = sand.u32 %s26, 1
          %s149 = scalar_lea.sflag [#allocation3], %s148
          %s150 = sand.u32 %s26, 1
          %s151 = smul.addr %s150, 64
          %s152 = scalar_lea.vmem [#allocation2], %s151
          %s153 = smul.u32 4, %s16
          %s155 = ssub.s32 1024, 1024
          %156 = vsyncadd %s149, %s155
          %s157 = smul.addr %s153, 2
          %s158 = smul.addr %s157, 128
          %s159 = scalar_lea.hbm %s0, %s158
          %s160 = sshll.u32 %s152, 4
          %s161 = int_to_ptr.vmem [resolvable:$true] %s160
          %166 = dma.hbm_to_vmem [thread:$0]  %s159, 1024, %s161, %s149, 256, 256, 16
        $region28: #{fan_layer.1} parent=23 // pred_fallthru
          _
      $region24: #{fan_layer.1} parent=5 // pred_fallthru
        _
      %p167 = scmp.le.s32.totalorder 1, %s16
      %p168 = scmp.lt.s32.totalorder %s16, 5
      %p169 = pnand %p167, %p168
      %p170 = pneg %p169
      // Predicated region
      $region29: #{fan_layer.1} parent=5 // pred_check
        _
      $region30: #{fan_layer.1} parent=5 // pred_check_branch
        %172 = sbr.rel (%p169) target = $region32
      $region31: #{fan_layer.1} parent=5 // pred_region
        %s173 = ssub.s32 %s16, 1
        %s174 = sand.u32 %s29, 1
        %s175 = scalar_lea.sflag [#allocation3], %s174
        %s176 = sand.u32 %s29, 1
        %s177 = smul.addr %s176, 64
        %s178 = scalar_lea.vmem [#allocation2], %s177
        // Predicated region
        $region33: #{fan_layer.1} parent=31 // pred_check
          %p179 = pneg %p42
        $region34: #{fan_layer.1} parent=31 // pred_check_branch
          %181 = sbr.rel (%p179) target = $region36
        $region35: #{fan_layer.1} parent=31 // pred_region
          %182 = dma.done %s175, 1024
        $region36: #{fan_layer.1} parent=31 // pred_fallthru
          _
        // Predicated region
        $region37: #{fan_layer.1} parent=31 // pred_check
          %p183 = pneg %p63
        $region38: #{fan_layer.1} parent=31 // pred_check_branch
          %185 = sbr.rel (%p183) target = $region40
        $region39: #{fan_layer.1} parent=31 // pred_region
          %186 = dma.done [#allocation6], 4096
        $region40: #{fan_layer.1} parent=31 // pred_fallthru
          _
        %s187 = sand.u32 %s29, 1
        %s188 = scalar_lea.sflag [#allocation3], %s187
        %s189 = sand.u32 %s29, 1
        %s190 = smul.addr %s189, 64
        %s191 = scalar_lea.vmem [#allocation2], %s190
        %p192 = pneg %p42
        %p193 = pneg %p39
        %p194 = pneg %p63
        %p195 = pneg %p60
        %p196 = pneg %p84
        %p197 = pneg %p81
        %p198 = pneg %p110
        %p199 = pneg %p107
        %s200 = sand.u32 %s97, 1
        %s201 = scalar_lea.sflag [#allocation4], %s200
        %s202 = sand.u32 %s97, 1
        %s203 = smul.addr %s202, 64
        %s204 = scalar_lea.vmem [#allocation7], %s203
        %s205 = smul.u32 4, %s21
        %s206 = smul.u32 4, %s21
        %v207 = vld [vmem:[%s178] sm:$0xff]
        %v208 = vld [vmem:[%s178 + $0x8] sm:$0xff]
        %v209 = vld [vmem:[%s178 + $0x10] sm:$0xff]
        %v210 = vld [vmem:[%s178 + $0x18] sm:$0xff]
        %v211 = vld [vmem:[%s178 + $0x20] sm:$0xff]
        %v212 = vld [vmem:[%s178 + $0x28] sm:$0xff]
        %v213 = vld [vmem:[%s178 + $0x30] sm:$0xff]
        %v214 = vld [vmem:[%s178 + $0x38] sm:$0xff]
        %v215 = vpack.c.bf16 %v209, %v207
        %v216 = vpack.c.bf16 %v210, %v208
        %v217 = vpack.c.bf16 %v213, %v211
        %v218 = vpack.c.bf16 %v214, %v212
        %v219 = vld [vmem:[#allocation5] sm:$0xff]
        %v220 = vld [vmem:[#allocation5 + $0x8] sm:$0xff]
        %v221 = vld [vmem:[#allocation5 + $0x10] sm:$0xff]
        %v222 = vld [vmem:[#allocation5 + $0x18] sm:$0xff]
        %v223 = vld [vmem:[#allocation5 + $0x20] sm:$0xff]
        %v224 = vld [vmem:[#allocation5 + $0x28] sm:$0xff]
        %v225 = vld [vmem:[#allocation5 + $0x30] sm:$0xff]
        %v226 = vld [vmem:[#allocation5 + $0x38] sm:$0xff]
        %v227 = vld [vmem:[#allocation5 + $0x40] sm:$0xff]
        %v228 = vld [vmem:[#allocation5 + $0x48] sm:$0xff]
        %v229 = vld [vmem:[#allocation5 + $0x50] sm:$0xff]
        %v230 = vld [vmem:[#allocation5 + $0x58] sm:$0xff]
        %v231 = vld [vmem:[#allocation5 + $0x60] sm:$0xff]
        %v232 = vld [vmem:[#allocation5 + $0x68] sm:$0xff]
        %v233 = vld [vmem:[#allocation5 + $0x70] sm:$0xff]
        %v234 = vld [vmem:[#allocation5 + $0x78] sm:$0xff]
        %v235 = vld [vmem:[#allocation5 + $0x80] sm:$0xff]
        %v236 = vld [vmem:[#allocation5 + $0x88] sm:$0xff]
        %v237 = vld [vmem:[#allocation5 + $0x90] sm:$0xff]
        %v238 = vld [vmem:[#allocation5 + $0x98] sm:$0xff]
        %v239 = vld [vmem:[#allocation5 + $0xa0] sm:$0xff]
        %v240 = vld [vmem:[#allocation5 + $0xa8] sm:$0xff]
        %v241 = vld [vmem:[#allocation5 + $0xb0] sm:$0xff]
        %v242 = vld [vmem:[#allocation5 + $0xb8] sm:$0xff]
        %v243 = vld [vmem:[#allocation5 + $0xc0] sm:$0xff]
        %v244 = vld [vmem:[#allocation5 + $0xc8] sm:$0xff]
        %v245 = vld [vmem:[#allocation5 + $0xd0] sm:$0xff]
        %v246 = vld [vmem:[#allocation5 + $0xd8] sm:$0xff]
        %v247 = vld [vmem:[#allocation5 + $0xe0] sm:$0xff]
        %v248 = vld [vmem:[#allocation5 + $0xe8] sm:$0xff]
        %v249 = vld [vmem:[#allocation5 + $0xf0] sm:$0xff]
        %v250 = vld [vmem:[#allocation5 + $0xf8] sm:$0xff]
        %v251 = vld [vmem:[%s2] sm:$0x3]
        %v253 = vlaneseq
        %v254 = vshrl.u32 %v253, 7
        %v255 = vsub.s32 0, %v254
        %v256 = vrot.slane %v251, %v255
        %v257 = vlaneseq
        %v258 = vshrl.u32 %v257, 7
        %v259 = vsub.s32 1, %v258
        %v260 = vrot.slane %v251, %v259
        %v295 = vunpack.c.l.b16 %v219
        %v296 = vunpack.c.h.b16 %v219
        %v297 = vunpack.c.l.b16 %v220
        %v298 = vunpack.c.h.b16 %v220
        %v299 = vunpack.c.l.b16 %v221
        %v300 = vunpack.c.h.b16 %v221
        %v301 = vunpack.c.l.b16 %v222
        %v302 = vunpack.c.h.b16 %v222
        %v303 = vunpack.c.l.b16 %v223
        %v304 = vunpack.c.h.b16 %v223
        %v305 = vunpack.c.l.b16 %v224
        %v306 = vunpack.c.h.b16 %v224
        %v307 = vunpack.c.l.b16 %v225
        %v308 = vunpack.c.h.b16 %v225
        %v309 = vunpack.c.l.b16 %v226
        %v310 = vunpack.c.h.b16 %v226
        %v311 = vunpack.c.l.b16 %v227
        %v312 = vunpack.c.h.b16 %v227
        %v313 = vunpack.c.l.b16 %v228
        %v314 = vunpack.c.h.b16 %v228
        %v315 = vunpack.c.l.b16 %v229
        %v316 = vunpack.c.h.b16 %v229
        %v317 = vunpack.c.l.b16 %v230
        %v318 = vunpack.c.h.b16 %v230
        %v319 = vunpack.c.l.b16 %v231
        %v320 = vunpack.c.h.b16 %v231
        %v321 = vunpack.c.l.b16 %v232
        %v322 = vunpack.c.h.b16 %v232
        %v323 = vunpack.c.l.b16 %v233
        %v324 = vunpack.c.h.b16 %v233
        %v325 = vunpack.c.l.b16 %v234
        %v326 = vunpack.c.h.b16 %v234
        %v327 = vunpack.c.l.b16 %v235
        %v328 = vunpack.c.h.b16 %v235
        %v329 = vunpack.c.l.b16 %v236
        %v330 = vunpack.c.h.b16 %v236
        %v331 = vunpack.c.l.b16 %v237
        %v332 = vunpack.c.h.b16 %v237
        %v333 = vunpack.c.l.b16 %v238
        %v334 = vunpack.c.h.b16 %v238
        %v335 = vunpack.c.l.b16 %v239
        %v336 = vunpack.c.h.b16 %v239
        %v337 = vunpack.c.l.b16 %v240
        %v338 = vunpack.c.h.b16 %v240
        %v339 = vunpack.c.l.b16 %v241
        %v340 = vunpack.c.h.b16 %v241
        %v341 = vunpack.c.l.b16 %v242
        %v342 = vunpack.c.h.b16 %v242
        %v343 = vunpack.c.l.b16 %v243
        %v344 = vunpack.c.h.b16 %v243
        %v345 = vunpack.c.l.b16 %v244
        %v346 = vunpack.c.h.b16 %v244
        %v347 = vunpack.c.l.b16 %v245
        %v348 = vunpack.c.h.b16 %v245
        %v349 = vunpack.c.l.b16 %v246
        %v350 = vunpack.c.h.b16 %v246
        %v351 = vunpack.c.l.b16 %v247
        %v352 = vunpack.c.h.b16 %v247
        %v353 = vunpack.c.l.b16 %v248
        %v354 = vunpack.c.h.b16 %v248
        %v355 = vunpack.c.l.b16 %v249
        %v356 = vunpack.c.h.b16 %v249
        %v357 = vunpack.c.l.b16 %v250
        %v358 = vunpack.c.h.b16 %v250
        %v359 = vpack.c.b16 %v297, %v295
        %v360 = vpack.c.b16 %v298, %v296
        %v361 = vpack.c.b16 %v301, %v299
        %v362 = vpack.c.b16 %v302, %v300
        %v363 = vpack.c.b16 %v305, %v303
        %v364 = vpack.c.b16 %v306, %v304
        %v365 = vpack.c.b16 %v309, %v307
        %v366 = vpack.c.b16 %v310, %v308
        %v367 = vpack.c.b16 %v313, %v311
        %v368 = vpack.c.b16 %v314, %v312
        %v369 = vpack.c.b16 %v317, %v315
        %v370 = vpack.c.b16 %v318, %v316
        %v371 = vpack.c.b16 %v321, %v319
        %v372 = vpack.c.b16 %v322, %v320
        %v373 = vpack.c.b16 %v325, %v323
        %v374 = vpack.c.b16 %v326, %v324
        %v375 = vpack.c.b16 %v329, %v327
        %v376 = vpack.c.b16 %v330, %v328
        %v377 = vpack.c.b16 %v333, %v331
        %v378 = vpack.c.b16 %v334, %v332
        %v379 = vpack.c.b16 %v337, %v335
        %v380 = vpack.c.b16 %v338, %v336
        %v381 = vpack.c.b16 %v341, %v339
        %v382 = vpack.c.b16 %v342, %v340
        %v383 = vpack.c.b16 %v345, %v343
        %v384 = vpack.c.b16 %v346, %v344
        %v385 = vpack.c.b16 %v349, %v347
        %v386 = vpack.c.b16 %v350, %v348
        %v387 = vpack.c.b16 %v353, %v351
        %v388 = vpack.c.b16 %v354, %v352
        %v389 = vpack.c.b16 %v357, %v355
        %v390 = vpack.c.b16 %v358, %v356
        %423 = vmatprep.subr.bf16.mxu0 %v374
        %424 = vmatpush1.bf16.msra.mxu0 %v373
        %425 = vmatprep.subr.bf16.mxu0 %v372
        %426 = vmatpush1.bf16.msra.mxu0 %v371
        %427 = vmatprep.subr.bf16.mxu0 %v370
        %428 = vmatpush1.bf16.msra.mxu0 %v369
        %429 = vmatprep.subr.bf16.mxu0 %v368
        %430 = vmatpush1.bf16.msra.mxu0 %v367
        %431 = vmatprep.subr.bf16.mxu0 %v366
        %432 = vmatpush1.bf16.msra.mxu0 %v365
        %433 = vmatprep.subr.bf16.mxu0 %v364
        %434 = vmatpush1.bf16.msra.mxu0 %v363
        %435 = vmatprep.subr.bf16.mxu0 %v362
        %436 = vmatpush1.bf16.msra.mxu0 %v361
        %437 = vmatprep.subr.bf16.mxu0 %v360
        %438 = vmatpush1.bf16.msra.mxu0 %v359
        %439 = vmatprep.subr.bf16.mxu0 %v390
        %440 = vmatpush2.bf16.msra.mxu0 %v389
        %441 = vmatprep.subr.bf16.mxu0 %v388
        %442 = vmatpush2.bf16.msra.mxu0 %v387
        %443 = vmatprep.subr.bf16.mxu0 %v386
        %444 = vmatpush2.bf16.msra.mxu0 %v385
        %445 = vmatprep.subr.bf16.mxu0 %v384
        %446 = vmatpush2.bf16.msra.mxu0 %v383
        %447 = vmatprep.subr.bf16.mxu0 %v382
        %448 = vmatpush2.bf16.msra.mxu0 %v381
        %449 = vmatprep.subr.bf16.mxu0 %v380
        %450 = vmatpush2.bf16.msra.mxu0 %v379
        %451 = vmatprep.subr.bf16.mxu0 %v378
        %452 = vmatpush2.bf16.msra.mxu0 %v377
        %453 = vmatprep.subr.bf16.mxu0 %v376
        %454 = vmatpush2.bf16.msra.mxu0 %v375
        %455 = vmatprep.mubr.bf16.mxu0 %v216
        %456 = vmatmul.mubr.bf16.gmra.mxu0 %v215
        %v457 = vpop.f32.mrf.mxu0
        %v458 = vadd.f32 %v256, %v457
        %v459 = vpop.f32.mrf.mxu0
        %v460 = vadd.f32 %v260, %v459
        %v461 = vpop.f32.mrf.mxu0
        %v462 = vadd.f32 %v256, %v461
        %v463 = vpop.f32.mrf.mxu0
        %v464 = vadd.f32 %v260, %v463
        %465 = vmatprep.mubr.bf16.mxu0 %v218
        %466 = vmatmul.mubr.bf16.gmra.mxu0 %v217
        %v467 = vpop.f32.mrf.mxu0
        %v468 = vadd.f32 %v256, %v467
        %v469 = vpop.f32.mrf.mxu0
        %v470 = vadd.f32 %v260, %v469
        %v471 = vpop.f32.mrf.mxu0
        %v472 = vadd.f32 %v256, %v471
        %v473 = vpop.f32.mrf.mxu0
        %v474 = vadd.f32 %v260, %v473
        %475 = vdwg.mxu0
        %v476 = vand.u32 2147483647, %v458
        %vm477 = vcmp.le.f32.partialorder %v476, 0.7853982
        %vm478 = vcmp.lt.s32.totalorder %v458, 0
        %v479 = vand.u32 %v458, 2139095040
        %v480 = vshrl.u32 %v479, 23
        %v481 = vsub.s32 %v480, 127
        %v482 = vand.u32 2147483647, %v458
        %v483 = vand.u32 %v482, 8388607
        %v484 = vor.u32 %v483, 8388608
        %v485 = vsub.s32 0, %v484
        %v486 = vadd.s32 %v481, 1
        %vm487 = vcmp.gt.s32.totalorder %v486, 0
        %v488 = vsel %vm487, %v486, 0
        %v489 = vshrl.u32 %v488, 5
        %v490 = vand.u32 %v488, 31
        %v491 = vsub.s32 32, %v490
        %v492 = vshrl.u32 683565275, %v491
        %v493 = vshll.u32 683565275, %v490
        %v494 = vshrl.u32 2475754826, %v491
        %v495 = vor.u32 %v493, %v494
        %v496 = vshll.u32 2475754826, %v490
        %v497 = vshrl.u32 2131351028, %v491
        %v498 = vor.u32 %v496, %v497
        %v499 = vshll.u32 2131351028, %v490
        %v500 = vshrl.u32 2102212464, %v491
        %v501 = vor.u32 %v499, %v500
        %v502 = vshll.u32 2102212464, %v490
        %v503 = vshrl.u32 920167782, %v491
        %v504 = vor.u32 %v502, %v503
        %v505 = vshll.u32 920167782, %v490
        %v506 = vshrl.u32 1326507024, %v491
        %v507 = vor.u32 %v505, %v506
        %vm508 = vcmp.lt.s32.totalorder %v489, 1
        %vm509 = vcmp.lt.s32.totalorder %v489, 2
        %vm510 = vcmp.lt.s32.totalorder %v489, 3
        %vm511 = vcmp.lt.s32.totalorder %v489, 4
        %v512 = vsel %vm508, %v492, %v495
        %v513 = vsel %vm511, %v501, 2102212464
        %v514 = vsel %vm510, %v498, %v513
        %v515 = vsel %vm509, %v512, %v514
        %v516 = vsel %vm508, %v495, %v498
        %v517 = vsel %vm511, %v504, 920167782
        %v518 = vsel %vm510, %v501, %v517
        %v519 = vsel %vm509, %v516, %v518
        %v520 = vsel %vm508, %v498, %v501
        %v521 = vsel %vm511, %v507, 1326507024
        %v522 = vsel %vm510, %v504, %v521
        %v523 = vsel %vm509, %v520, %v522
        %v524 = vshll.u32 %v484, 8
        %v525 = vmul.u32.u64.compose %v524, %v523
        %v526 = vextract.low.u32 %v525
        %v527 = vextract.high.u32 %v525
        %v528 = vmul.u32.u64.compose %v524, %v519
        %v529 = vextract.low.u32 %v528
        %v530 = vextract.high.u32 %v528
        %v531 = vmul.u32 %v524, %v515
        %v532 = vadd.s32 %v527, %v529
        %vm533 = vc.u32 %v527, %v529
        %v534 = vadd.s32 %v530, 1
        %v535 = vsel %vm533, %v534, %v530
        %v536 = vadd.s32 %v531, %v535
        %v537 = vadd.s32 %v536, 536870912
        %v538 = vshrl.u32 %v537, 30
        %v539 = vshll.u32 %v538, 30
        %v540 = vsub.s32 %v536, %v539
        %vm541 = vcmp.lt.s32.totalorder %v540, 0
        %v542 = vsub.s32 0, %v540
        %v543 = vsel %vm541, %v542, %v540
        %v544 = vclz %v543
        %v545 = vsub.s32 %v544, 2
        %vm546 = vcmp.gt.s32.totalorder 0, %v545
        %v547 = vsel %vm546, 0, %v545
        %v548 = vsub.s32 32, %v547
        %v549 = vshll.u32 %v540, %v547
        %v550 = vshrl.u32 %v532, %v548
        %v551 = vor.u32 %v549, %v550
        %v552 = vsub.s32 4294967266, %v547
        %v553 = vadd.s32 %v552, 127
        %v554 = vshll.u32 %v553, 23
        %v555 = vor.u32 4788187, %v554
        %v556 = vand.u32 2147483647, %v555
        %v558 = vcvt.s32.f32 %v551
        %v559 = vmul.f32 %v558, %v556
        %v560 = vxor.u32 %v559, 2147483648
        %v561 = vsel %vm478, %v560, %v559
        %v562 = vsub.s32 4, %v538
        %v563 = vsel %vm478, %v562, %v538
        %v564 = vsel %vm477, %v458, %v561
        %v565 = vsel %vm477, 0, %v563
        %v566 = vcosq.f32.pop %v564
        %v567 = vsinq.f32.pop %v564
        %vm568 = vweird.f32 %v458
        %v569 = vand.u32 %v565, 3
        %vm570 = vcmp.lt.s32.totalorder %v569, 2
        %vm571 = vcmp.eq.s32.totalorder %v569, 0
        %v572 = vxor.u32 %v567, 2147483648
        %v573 = vsel %vm571, %v566, %v572
        %vm574 = vcmp.eq.s32.totalorder %v569, 2
        %v575 = vxor.u32 %v566, 2147483648
        %v576 = vsel %vm574, %v575, %v567
        %v577 = vsel %vm570, %v573, %v576
        %v578 = vsel %vm568, nan, %v577
        %v579 = vand.u32 2147483647, %v462
        %vm580 = vcmp.le.f32.partialorder %v579, 0.7853982
        %vm581 = vcmp.lt.s32.totalorder %v462, 0
        %v582 = vand.u32 %v462, 2139095040
        %v583 = vshrl.u32 %v582, 23
        %v584 = vsub.s32 %v583, 127
        %v585 = vand.u32 2147483647, %v462
        %v586 = vand.u32 %v585, 8388607
        %v587 = vor.u32 %v586, 8388608
        %v588 = vsub.s32 0, %v587
        %v589 = vadd.s32 %v584, 1
        %vm590 = vcmp.gt.s32.totalorder %v589, 0
        %v591 = vsel %vm590, %v589, 0
        %v592 = vshrl.u32 %v591, 5
        %v593 = vand.u32 %v591, 31
        %v594 = vsub.s32 32, %v593
        %v595 = vshrl.u32 683565275, %v594
        %v596 = vshll.u32 683565275, %v593
        %v597 = vshrl.u32 2475754826, %v594
        %v598 = vor.u32 %v596, %v597
        %v599 = vshll.u32 2475754826, %v593
        %v600 = vshrl.u32 2131351028, %v594
        %v601 = vor.u32 %v599, %v600
        %v602 = vshll.u32 2131351028, %v593
        %v603 = vshrl.u32 2102212464, %v594
        %v604 = vor.u32 %v602, %v603
        %v605 = vshll.u32 2102212464, %v593
        %v606 = vshrl.u32 920167782, %v594
        %v607 = vor.u32 %v605, %v606
        %v608 = vshll.u32 920167782, %v593
        %v609 = vshrl.u32 1326507024, %v594
        %v610 = vor.u32 %v608, %v609
        %vm611 = vcmp.lt.s32.totalorder %v592, 1
        %vm612 = vcmp.lt.s32.totalorder %v592, 2
        %vm613 = vcmp.lt.s32.totalorder %v592, 3
        %vm614 = vcmp.lt.s32.totalorder %v592, 4
        %v615 = vsel %vm611, %v595, %v598
        %v616 = vsel %vm614, %v604, 2102212464
        %v617 = vsel %vm613, %v601, %v616
        %v618 = vsel %vm612, %v615, %v617
        %v619 = vsel %vm611, %v598, %v601
        %v620 = vsel %vm614, %v607, 920167782
        %v621 = vsel %vm613, %v604, %v620
        %v622 = vsel %vm612, %v619, %v621
        %v623 = vsel %vm611, %v601, %v604
        %v624 = vsel %vm614, %v610, 1326507024
        %v625 = vsel %vm613, %v607, %v624
        %v626 = vsel %vm612, %v623, %v625
        %v627 = vshll.u32 %v587, 8
        %v628 = vmul.u32.u64.compose %v627, %v626
        %v629 = vextract.low.u32 %v628
        %v630 = vextract.high.u32 %v628
        %v631 = vmul.u32.u64.compose %v627, %v622
        %v632 = vextract.low.u32 %v631
        %v633 = vextract.high.u32 %v631
        %v634 = vmul.u32 %v627, %v618
        %v635 = vadd.s32 %v630, %v632
        %vm636 = vc.u32 %v630, %v632
        %v637 = vadd.s32 %v633, 1
        %v638 = vsel %vm636, %v637, %v633
        %v639 = vadd.s32 %v634, %v638
        %v640 = vadd.s32 %v639, 536870912
        %v641 = vshrl.u32 %v640, 30
        %v642 = vshll.u32 %v641, 30
        %v643 = vsub.s32 %v639, %v642
        %vm644 = vcmp.lt.s32.totalorder %v643, 0
        %v645 = vsub.s32 0, %v643
        %v646 = vsel %vm644, %v645, %v643
        %v647 = vclz %v646
        %v648 = vsub.s32 %v647, 2
        %vm649 = vcmp.gt.s32.totalorder 0, %v648
        %v650 = vsel %vm649, 0, %v648
        %v651 = vsub.s32 32, %v650
        %v652 = vshll.u32 %v643, %v650
        %v653 = vshrl.u32 %v635, %v651
        %v654 = vor.u32 %v652, %v653
        %v655 = vsub.s32 4294967266, %v650
        %v656 = vadd.s32 %v655, 127
        %v657 = vshll.u32 %v656, 23
        %v658 = vor.u32 4788187, %v657
        %v659 = vand.u32 2147483647, %v658
        %v661 = vcvt.s32.f32 %v654
        %v662 = vmul.f32 %v661, %v659
        %v663 = vxor.u32 %v662, 2147483648
        %v664 = vsel %vm581, %v663, %v662
        %v665 = vsub.s32 4, %v641
        %v666 = vsel %vm581, %v665, %v641
        %v667 = vsel %vm580, %v462, %v664
        %v668 = vsel %vm580, 0, %v666
        %v669 = vcosq.f32.pop %v667
        %v670 = vsinq.f32.pop %v667
        %vm671 = vweird.f32 %v462
        %v672 = vand.u32 %v668, 3
        %vm673 = vcmp.lt.s32.totalorder %v672, 2
        %vm674 = vcmp.eq.s32.totalorder %v672, 0
        %v675 = vxor.u32 %v670, 2147483648
        %v676 = vsel %vm674, %v669, %v675
        %vm677 = vcmp.eq.s32.totalorder %v672, 2
        %v678 = vxor.u32 %v669, 2147483648
        %v679 = vsel %vm677, %v678, %v670
        %v680 = vsel %vm673, %v676, %v679
        %v681 = vsel %vm671, nan, %v680
        %v682 = vand.u32 2147483647, %v468
        %vm683 = vcmp.le.f32.partialorder %v682, 0.7853982
        %vm684 = vcmp.lt.s32.totalorder %v468, 0
        %v685 = vand.u32 %v468, 2139095040
        %v686 = vshrl.u32 %v685, 23
        %v687 = vsub.s32 %v686, 127
        %v688 = vand.u32 2147483647, %v468
        %v689 = vand.u32 %v688, 8388607
        %v690 = vor.u32 %v689, 8388608
        %v691 = vsub.s32 0, %v690
        %v692 = vadd.s32 %v687, 1
        %vm693 = vcmp.gt.s32.totalorder %v692, 0
        %v694 = vsel %vm693, %v692, 0
        %v695 = vshrl.u32 %v694, 5
        %v696 = vand.u32 %v694, 31
        %v697 = vsub.s32 32, %v696
        %v698 = vshrl.u32 683565275, %v697
        %v699 = vshll.u32 683565275, %v696
        %v700 = vshrl.u32 2475754826, %v697
        %v701 = vor.u32 %v699, %v700
        %v702 = vshll.u32 2475754826, %v696
        %v703 = vshrl.u32 2131351028, %v697
        %v704 = vor.u32 %v702, %v703
        %v705 = vshll.u32 2131351028, %v696
        %v706 = vshrl.u32 2102212464, %v697
        %v707 = vor.u32 %v705, %v706
        %v708 = vshll.u32 2102212464, %v696
        %v709 = vshrl.u32 920167782, %v697
        %v710 = vor.u32 %v708, %v709
        %v711 = vshll.u32 920167782, %v696
        %v712 = vshrl.u32 1326507024, %v697
        %v713 = vor.u32 %v711, %v712
        %vm714 = vcmp.lt.s32.totalorder %v695, 1
        %vm715 = vcmp.lt.s32.totalorder %v695, 2
        %vm716 = vcmp.lt.s32.totalorder %v695, 3
        %vm717 = vcmp.lt.s32.totalorder %v695, 4
        %v718 = vsel %vm714, %v698, %v701
        %v719 = vsel %vm717, %v707, 2102212464
        %v720 = vsel %vm716, %v704, %v719
        %v721 = vsel %vm715, %v718, %v720
        %v722 = vsel %vm714, %v701, %v704
        %v723 = vsel %vm717, %v710, 920167782
        %v724 = vsel %vm716, %v707, %v723
        %v725 = vsel %vm715, %v722, %v724
        %v726 = vsel %vm714, %v704, %v707
        %v727 = vsel %vm717, %v713, 1326507024
        %v728 = vsel %vm716, %v710, %v727
        %v729 = vsel %vm715, %v726, %v728
        %v730 = vshll.u32 %v690, 8
        %v731 = vmul.u32.u64.compose %v730, %v729
        %v732 = vextract.low.u32 %v731
        %v733 = vextract.high.u32 %v731
        %v734 = vmul.u32.u64.compose %v730, %v725
        %v735 = vextract.low.u32 %v734
        %v736 = vextract.high.u32 %v734
        %v737 = vmul.u32 %v730, %v721
        %v738 = vadd.s32 %v733, %v735
        %vm739 = vc.u32 %v733, %v735
        %v740 = vadd.s32 %v736, 1
        %v741 = vsel %vm739, %v740, %v736
        %v742 = vadd.s32 %v737, %v741
        %v743 = vadd.s32 %v742, 536870912
        %v744 = vshrl.u32 %v743, 30
        %v745 = vshll.u32 %v744, 30
        %v746 = vsub.s32 %v742, %v745
        %vm747 = vcmp.lt.s32.totalorder %v746, 0
        %v748 = vsub.s32 0, %v746
        %v749 = vsel %vm747, %v748, %v746
        %v750 = vclz %v749
        %v751 = vsub.s32 %v750, 2
        %vm752 = vcmp.gt.s32.totalorder 0, %v751
        %v753 = vsel %vm752, 0, %v751
        %v754 = vsub.s32 32, %v753
        %v755 = vshll.u32 %v746, %v753
        %v756 = vshrl.u32 %v738, %v754
        %v757 = vor.u32 %v755, %v756
        %v758 = vsub.s32 4294967266, %v753
        %v759 = vadd.s32 %v758, 127
        %v760 = vshll.u32 %v759, 23
        %v761 = vor.u32 4788187, %v760
        %v762 = vand.u32 2147483647, %v761
        %v764 = vcvt.s32.f32 %v757
        %v765 = vmul.f32 %v764, %v762
        %v766 = vxor.u32 %v765, 2147483648
        %v767 = vsel %vm684, %v766, %v765
        %v768 = vsub.s32 4, %v744
        %v769 = vsel %vm684, %v768, %v744
        %v770 = vsel %vm683, %v468, %v767
        %v771 = vsel %vm683, 0, %v769
        %v772 = vcosq.f32.pop %v770
        %v773 = vsinq.f32.pop %v770
        %vm774 = vweird.f32 %v468
        %v775 = vand.u32 %v771, 3
        %vm776 = vcmp.lt.s32.totalorder %v775, 2
        %vm777 = vcmp.eq.s32.totalorder %v775, 0
        %v778 = vxor.u32 %v773, 2147483648
        %v779 = vsel %vm777, %v772, %v778
        %vm780 = vcmp.eq.s32.totalorder %v775, 2
        %v781 = vxor.u32 %v772, 2147483648
        %v782 = vsel %vm780, %v781, %v773
        %v783 = vsel %vm776, %v779, %v782
        %v784 = vsel %vm774, nan, %v783
        %v785 = vand.u32 2147483647, %v472
        %vm786 = vcmp.le.f32.partialorder %v785, 0.7853982
        %vm787 = vcmp.lt.s32.totalorder %v472, 0
        %v788 = vand.u32 %v472, 2139095040
        %v789 = vshrl.u32 %v788, 23
        %v790 = vsub.s32 %v789, 127
        %v791 = vand.u32 2147483647, %v472
        %v792 = vand.u32 %v791, 8388607
        %v793 = vor.u32 %v792, 8388608
        %v794 = vsub.s32 0, %v793
        %v795 = vadd.s32 %v790, 1
        %vm796 = vcmp.gt.s32.totalorder %v795, 0
        %v797 = vsel %vm796, %v795, 0
        %v798 = vshrl.u32 %v797, 5
        %v799 = vand.u32 %v797, 31
        %v800 = vsub.s32 32, %v799
        %v801 = vshrl.u32 683565275, %v800
        %v802 = vshll.u32 683565275, %v799
        %v803 = vshrl.u32 2475754826, %v800
        %v804 = vor.u32 %v802, %v803
        %v805 = vshll.u32 2475754826, %v799
        %v806 = vshrl.u32 2131351028, %v800
        %v807 = vor.u32 %v805, %v806
        %v808 = vshll.u32 2131351028, %v799
        %v809 = vshrl.u32 2102212464, %v800
        %v810 = vor.u32 %v808, %v809
        %v811 = vshll.u32 2102212464, %v799
        %v812 = vshrl.u32 920167782, %v800
        %v813 = vor.u32 %v811, %v812
        %v814 = vshll.u32 920167782, %v799
        %v815 = vshrl.u32 1326507024, %v800
        %v816 = vor.u32 %v814, %v815
        %vm817 = vcmp.lt.s32.totalorder %v798, 1
        %vm818 = vcmp.lt.s32.totalorder %v798, 2
        %vm819 = vcmp.lt.s32.totalorder %v798, 3
        %vm820 = vcmp.lt.s32.totalorder %v798, 4
        %v821 = vsel %vm817, %v801, %v804
        %v822 = vsel %vm820, %v810, 2102212464
        %v823 = vsel %vm819, %v807, %v822
        %v824 = vsel %vm818, %v821, %v823
        %v825 = vsel %vm817, %v804, %v807
        %v826 = vsel %vm820, %v813, 920167782
        %v827 = vsel %vm819, %v810, %v826
        %v828 = vsel %vm818, %v825, %v827
        %v829 = vsel %vm817, %v807, %v810
        %v830 = vsel %vm820, %v816, 1326507024
        %v831 = vsel %vm819, %v813, %v830
        %v832 = vsel %vm818, %v829, %v831
        %v833 = vshll.u32 %v793, 8
        %v834 = vmul.u32.u64.compose %v833, %v832
        %v835 = vextract.low.u32 %v834
        %v836 = vextract.high.u32 %v834
        %v837 = vmul.u32.u64.compose %v833, %v828
        %v838 = vextract.low.u32 %v837
        %v839 = vextract.high.u32 %v837
        %v840 = vmul.u32 %v833, %v824
        %v841 = vadd.s32 %v836, %v838
        %vm842 = vc.u32 %v836, %v838
        %v843 = vadd.s32 %v839, 1
        %v844 = vsel %vm842, %v843, %v839
        %v845 = vadd.s32 %v840, %v844
        %v846 = vadd.s32 %v845, 536870912
        %v847 = vshrl.u32 %v846, 30
        %v848 = vshll.u32 %v847, 30
        %v849 = vsub.s32 %v845, %v848
        %vm850 = vcmp.lt.s32.totalorder %v849, 0
        %v851 = vsub.s32 0, %v849
        %v852 = vsel %vm850, %v851, %v849
        %v853 = vclz %v852
        %v854 = vsub.s32 %v853, 2
        %vm855 = vcmp.gt.s32.totalorder 0, %v854
        %v856 = vsel %vm855, 0, %v854
        %v857 = vsub.s32 32, %v856
        %v858 = vshll.u32 %v849, %v856
        %v859 = vshrl.u32 %v841, %v857
        %v860 = vor.u32 %v858, %v859
        %v861 = vsub.s32 4294967266, %v856
        %v862 = vadd.s32 %v861, 127
        %v863 = vshll.u32 %v862, 23
        %v864 = vor.u32 4788187, %v863
        %v865 = vand.u32 2147483647, %v864
        %v867 = vcvt.s32.f32 %v860
        %v868 = vmul.f32 %v867, %v865
        %v869 = vxor.u32 %v868, 2147483648
        %v870 = vsel %vm787, %v869, %v868
        %v871 = vsub.s32 4, %v847
        %v872 = vsel %vm787, %v871, %v847
        %v873 = vsel %vm786, %v472, %v870
        %v874 = vsel %vm786, 0, %v872
        %v875 = vcosq.f32.pop %v873
        %v876 = vsinq.f32.pop %v873
        %vm877 = vweird.f32 %v472
        %v878 = vand.u32 %v874, 3
        %vm879 = vcmp.lt.s32.totalorder %v878, 2
        %vm880 = vcmp.eq.s32.totalorder %v878, 0
        %v881 = vxor.u32 %v876, 2147483648
        %v882 = vsel %vm880, %v875, %v881
        %vm883 = vcmp.eq.s32.totalorder %v878, 2
        %v884 = vxor.u32 %v875, 2147483648
        %v885 = vsel %vm883, %v884, %v876
        %v886 = vsel %vm879, %v882, %v885
        %v887 = vsel %vm877, nan, %v886
        %v888 = vmul.f32 %v460, 0.5
        %v889 = vmul.f32 %v464, 0.5
        %v890 = vmul.f32 %v470, 0.5
        %v891 = vmul.f32 %v474, 0.5
        %v892 = vmul.f32 %v460, 0.70710677
        %v893 = vmul.f32 %v464, 0.70710677
        %v894 = vmul.f32 %v470, 0.70710677
        %v895 = vmul.f32 %v474, 0.70710677
        %v896 = verf.f32.pop %v892
        %v897 = verf.f32.pop %v893
        %v898 = verf.f32.pop %v894
        %v899 = verf.f32.pop %v895
        %v900 = vadd.f32 %v896, 1.0
        %v901 = vadd.f32 %v897, 1.0
        %v902 = vadd.f32 %v898, 1.0
        %v903 = vadd.f32 %v899, 1.0
        %v904 = vmul.f32 %v888, %v900
        %v905 = vmul.f32 %v889, %v901
        %v906 = vmul.f32 %v890, %v902
        %v907 = vmul.f32 %v891, %v903
        %908 = vst [vmem:[%s204] sm:$0xff] %v578
        %909 = vst [vmem:[%s204 + $0x10] sm:$0xff] %v681
        %910 = vst [vmem:[%s204 + $0x20] sm:$0xff] %v784
        %911 = vst [vmem:[%s204 + $0x30] sm:$0xff] %v887
        %912 = vst [vmem:[%s204 + $0x8] sm:$0xff] %v904
        %913 = vst [vmem:[%s204 + $0x18] sm:$0xff] %v905
        %914 = vst [vmem:[%s204 + $0x28] sm:$0xff] %v906
        %915 = vst [vmem:[%s204 + $0x38] sm:$0xff] %v907
        %s916 = sand.u32 %s97, 1
        %s917 = scalar_lea.sflag [#allocation4], %s916
        %s918 = sand.u32 %s97, 1
        %s919 = smul.addr %s918, 64
        %s920 = scalar_lea.vmem [#allocation7], %s919
        // Predicated region
        $region41: #{fan_layer.1} parent=31 // pred_check
          %p921 = pneg %p107
        $region42: #{fan_layer.1} parent=31 // pred_check_branch
          %923 = sbr.rel (%p921) target = $region44
        $region43: #{fan_layer.1} parent=31 // pred_region
          %s924 = smul.u32 4, %s21
          %s926 = ssub.s32 1024, 1024
          %927 = vsyncadd %s917, %s926
          %s928 = smul.addr %s924, 2
          %s929 = smul.addr %s928, 128
          %s930 = scalar_lea.hbm %s3, %s929
          %s931 = sshll.u32 %s920, 4
          %s932 = int_to_ptr.vmem [resolvable:$true] %s931
          %937 = dma.vmem_to_hbm [thread:$0]  %s932, 1024, %s930, %s917, 256, 256, 16
        $region44: #{fan_layer.1} parent=31 // pred_fallthru
          _
      $region32: #{fan_layer.1} parent=5 // pred_fallthru
        _
      %p938 = scmp.le.s32.totalorder 2, %s16
      // Predicated region
      $region45: #{fan_layer.1} parent=5 // pred_check
        %p939 = pneg %p938
      $region46: #{fan_layer.1} parent=5 // pred_check_branch
        %941 = sbr.rel (%p939) target = $region48
      $region47: #{fan_layer.1} parent=5 // pred_region
        %s942 = ssub.s32 %s16, 2
        // Predicated region
        $region49: #{fan_layer.1} parent=47 // pred_check
          %p943 = pneg %p113
        $region50: #{fan_layer.1} parent=47 // pred_check_branch
          %945 = sbr.rel (%p943) target = $region52
        $region51: #{fan_layer.1} parent=47 // pred_region
          %s946 = sand.u32 %s98, 1
          %s947 = scalar_lea.sflag [#allocation4], %s946
          %s948 = sand.u32 %s98, 1
          %s949 = smul.addr %s948, 64
          %s950 = scalar_lea.vmem [#allocation7], %s949
          %951 = dma.done %s947, 1024
        $region52: #{fan_layer.1} parent=47 // pred_fallthru
          _
      $region48: #{fan_layer.1} parent=5 // pred_fallthru
        _
    $region6: #{fan_layer.1} parent=1 // loop_footer
      %s20 = sadd.s32 1, %s16
    $region7: #{fan_layer.1} parent=1 // loop_footer_branch
      %15 = sbr.rel target = $region3
    $region8: #{fan_layer.1} parent=1 // loop_exit
      _
    %952 = vsyncpa [#allocation3], 1
    %s953 = scalar_lea.sflag [#allocation3], 1
    %954 = vsyncpa %s953, 1
    %955 = vsyncpa [#allocation6], 1
    %956 = vsyncpa [#allocation4], 1
    %s957 = scalar_lea.sflag [#allocation4], 1
    %958 = vsyncpa %s957, 1

</llo_original>
